<compile_context>
chip_gen: v7x
topology: tpu7x:2x2x1
jax: 0.10.0
libtpu: 0.0.40
codegen_flags: <defaults>
</compile_context>

<pallas_src>
import jax
import jax.numpy as jnp
from jax.experimental import pallas as pl
from jax.experimental.pallas import tpu as pltpu


def _round_up(n, m):
    return ((n + m - 1) // m) * m


def vanilla_rnn_kernel(x_ref, wxb_ref, whh_ref, wpb_ref, p_ref):
    """
    x_ref   : (T*Bp, 1) f32  time-major, batch padded to Bp (multiple of 8)
    wxb_ref : (8, H)   f32   row 0 = W_hx (input_dim == 1), row 1 = b_h
    whh_ref : (H, H)   bf16  recurrent weights (pre-cast outside)
    wpb_ref : (H+8, Cp) f32  rows [0:H] = W_ph (lane-padded), row H = b_p
    p_ref   : (Bp, Cp) f32   padded logits of the last step
    """
    Bp, Cp = p_ref.shape
    H = whh_ref.shape[0]
    T = x_ref.shape[0] // Bp

    x = x_ref[...]                                  # (T*Bp, 1) f32
    wxb = wxb_ref[...]                              # (8, H)   f32
    whh = whh_ref[...]                              # (H, H)   bf16
    wpb = wpb_ref[...]                              # (H+8, Cp) f32

    whx = wxb[0:1, :]                               # (1, H)
    bh = wxb[1:2, :]                                # (1, H)

    # Hoisted input projection for all steps at once (off the serial chain):
    # xwb[t*Bp:(t+1)*Bp] = x_t * W_hx + b_h
    xwb = x * whx + bh                              # (T*Bp, H) f32

    # Strictly serial recurrence, fully unrolled (T static & small).
    # Per step: bf16 MXU matmul (f32 accum) -> f32 add -> f32 tanh -> bf16 cast.
    h = jnp.zeros((Bp, H), jnp.bfloat16)
    for t in range(T):
        hh = jnp.dot(h, whh, preferred_element_type=jnp.float32)     # (Bp, H) f32
        h = jnp.tanh(xwb[t * Bp:(t + 1) * Bp, :] + hh).astype(jnp.bfloat16)

    # One-shot output projection in f32 (single matmul, error not compounded).
    wph = wpb[:H, :]                                # (H, Cp)
    bp = wpb[H:H + 1, :]                            # (1, Cp)
    p = jnp.dot(h.astype(jnp.float32), wph,
                preferred_element_type=jnp.float32) + bp
    p_ref[...] = p                                  # full (8, 128) unmasked vst


def prepare_vanilla_rnn_params(W_hx, W_hh, W_ph, b_h, b_p):
    """One-time weight prep (keep OUT of the per-call path)."""
    H = W_hh.shape[0]
    C = W_ph.shape[1]
    Cp = _round_up(C, 128)

    # Pack W_hx (input_dim == 1) and b_h into one sublane-aligned (8, H) slab.
    wxb = jnp.zeros((8, H), jnp.float32)
    wxb = wxb.at[0, :].set(W_hx.reshape(-1).astype(jnp.float32))
    wxb = wxb.at[1, :].set(b_h.reshape(-1).astype(jnp.float32))

    # Recurrent weights pre-cast to bf16 (halves the largest operand's DMA).
    whh_bf16 = W_hh.astype(jnp.bfloat16)

    # Lane-dense output-projection slab: rows [0:H] = W_ph, row H = b_p,
    # zero padding elsewhere (so padded logit columns are exactly 0).
    wpb = jnp.zeros((H + 8, Cp), jnp.float32)
    wpb = wpb.at[:H, :C].set(W_ph.astype(jnp.float32))
    wpb = wpb.at[H, :C].set(b_p.reshape(-1).astype(jnp.float32))

    return {"wxb": wxb, "whh": whh_bf16, "wpb": wpb,
            "H": H, "C": C, "Cp": Cp}


def vanilla_rnn_forward(x, params):
    """Per-call path: only x is transformed; weights are pre-prepped."""
    B, T = x.shape
    Cp = params["Cp"]
    C = params["C"]
    Bp = _round_up(max(B, 8), 8)

    # Batch padded to a full sublane group, time-major, flat (T*Bp, 1):
    # per-step indexing in the kernel becomes a static 8-row sublane slice.
    xp = jnp.zeros((Bp, T), jnp.float32).at[:B, :].set(x.astype(jnp.float32))
    x_flat = xp.T.reshape(T * Bp, 1)

    vmem = pl.BlockSpec(memory_space=pltpu.MemorySpace.VMEM)
    # Single grid point: every operand is a few KB and fits in VMEM/vregs.
    p_pad = pl.pallas_call(
        vanilla_rnn_kernel,
        out_shape=jax.ShapeDtypeStruct((Bp, Cp), jnp.float32),
        in_specs=[vmem] * 4,
        out_specs=vmem,
    )(x_flat, params["wxb"], params["whh"], params["wpb"])

    return p_pad[:B, :C]


def vanilla_rnn_reference(x, W_hx, W_hh, W_ph, b_h, b_p, mixed=False):
    """Pure-JAX reference mirroring the PyTorch forward.  With mixed=True it
    mirrors the kernel's precision contract (bf16-carried h, bf16 W_hh,
    f32 accumulation, f32 final projection from the bf16-rounded h)."""
    B, T = x.shape
    H = W_hh.shape[0]
    rdt = jnp.bfloat16 if mixed else jnp.float32
    W_hh_r = W_hh.astype(rdt)
    h = jnp.zeros((B, H), rdt)
    for t in range(T):
        x_t = x[:, t:t + 1].astype(jnp.float32)                     # (B, 1)
        hh = jnp.dot(h, W_hh_r, preferred_element_type=jnp.float32)
        h = jnp.tanh(x_t @ W_hx + hh + b_h).astype(rdt)
    return jnp.dot(h.astype(jnp.float32), W_ph,
                   preferred_element_type=jnp.float32) + b_p


if __name__ == "__main__":
    # Small shapes consistent with the module's forward: input_dim is forced
    # to 1 by the `x_t.reshape(-1, 1)` in the PyTorch code.
    batch_size = 2
    seq_length = 8
    input_dim = 1
    num_hidden = 32
    num_classes = 10

    key = jax.random.PRNGKey(0)
    kx, k1, k2, k3 = jax.random.split(key, 4)

    x = jax.random.normal(kx, (batch_size, seq_length), dtype=jnp.float32)
    W_hx = jax.random.normal(k1, (input_dim, num_hidden), dtype=jnp.float32)
    # 1/sqrt(H) scaling keeps the recurrence well-conditioned so the bf16
    # recurrent matmul stays within a tight numerical tolerance of f32.
    W_hh = jax.random.normal(k2, (num_hidden, num_hidden),
                             dtype=jnp.float32) / jnp.sqrt(num_hidden)
    W_ph = jax.random.normal(k3, (num_hidden, num_classes),
                             dtype=jnp.float32) / jnp.sqrt(num_hidden)
    b_h = jnp.zeros((num_hidden,), dtype=jnp.float32)
    b_p = jnp.zeros((num_classes,), dtype=jnp.float32)

    # One-time weight prep (hoisted out of the per-call path).
    params = prepare_vanilla_rnn_params(W_hx, W_hh, W_ph, b_h, b_p)
    forward = jax.jit(lambda xb: vanilla_rnn_forward(xb, params))

    out = forward(x)
    out = jax.block_until_ready(out)
    assert out.shape == (batch_size, num_classes)

    # Check against a reference mirroring the kernel's bf16 recurrence.
    ref_mixed = vanilla_rnn_reference(x, W_hx, W_hh, W_ph, b_h, b_p, mixed=True)
    assert jnp.allclose(out, ref_mixed, atol=1e-2, rtol=1e-2)

    # Semantic check against the pure-f32 PyTorch forward (tolerance loosened
    # for the bf16-carried recurrence).
    ref_f32 = vanilla_rnn_reference(x, W_hx, W_hh, W_ph, b_h, b_p)
    assert jnp.allclose(out, ref_f32, atol=1e-1, rtol=1e-1)

    print("KERNEL_OK")
</pallas_src>

<mosaic_0001>
module attributes {stable_mosaic.version = 11 : i64} {
  func.func @vanilla_rnn_kernel(%arg0: memref<64x1xf32, #tpu.memory_space<vmem>>, %arg1: memref<8x32xf32, #tpu.memory_space<vmem>>, %arg2: memref<32x32xbf16, #tpu.memory_space<vmem>>, %arg3: memref<40x128xf32, #tpu.memory_space<vmem>>, %arg4: memref<8x128xf32, #tpu.memory_space<vmem>>) attributes {dimension_semantics = [], scalar_prefetch = 0 : i64, scratch_operands = 0 : i64, tpu.core_type = #tpu.core_type<tc>} {
    %c0 = arith.constant 0 : index
    %c0_0 = arith.constant 0 : index
    %0 = vector.load %arg0[%c0, %c0_0] : memref<64x1xf32, #tpu.memory_space<vmem>>, vector<64x1xf32>
    %c0_1 = arith.constant 0 : index
    %c0_2 = arith.constant 0 : index
    %1 = vector.load %arg1[%c0_1, %c0_2] : memref<8x32xf32, #tpu.memory_space<vmem>>, vector<8x32xf32>
    %c0_3 = arith.constant 0 : index
    %c0_4 = arith.constant 0 : index
    %2 = vector.load %arg2[%c0_3, %c0_4] : memref<32x32xbf16, #tpu.memory_space<vmem>>, vector<32x32xbf16>
    %c0_5 = arith.constant 0 : index
    %c0_6 = arith.constant 0 : index
    %3 = vector.load %arg3[%c0_5, %c0_6] : memref<40x128xf32, #tpu.memory_space<vmem>>, vector<40x128xf32>
    %4 = vector.extract_strided_slice %1 {offsets = [0, 0], sizes = [1, 32], strides = [1, 1]} : vector<8x32xf32> to vector<1x32xf32>
    %5 = vector.extract_strided_slice %1 {offsets = [1, 0], sizes = [1, 32], strides = [1, 1]} : vector<8x32xf32> to vector<1x32xf32>
    %6 = vector.broadcast %0 : vector<64x1xf32> to vector<64x32xf32>
    %7 = vector.broadcast %4 : vector<1x32xf32> to vector<64x32xf32>
    %8 = arith.mulf %6, %7 : vector<64x32xf32>
    %9 = vector.broadcast %5 : vector<1x32xf32> to vector<64x32xf32>
    %10 = arith.addf %8, %9 : vector<64x32xf32>
    %cst = arith.constant 0.000000e+00 : bf16
    %11 = vector.broadcast %cst : bf16 to vector<8x32xbf16>
    %cst_7 = arith.constant dense<0.000000e+00> : vector<8x32xf32>
    %12 = tpu.matmul %11, %2, %cst_7 {dimension_numbers = #tpu.dot_dimension_numbers<[1], [0], [0], [1], [0, 0, 1, 1], [], []>} : vector<8x32xbf16>, vector<32x32xbf16>, vector<8x32xf32> -> vector<8x32xf32>
    %13 = vector.extract_strided_slice %10 {offsets = [0, 0], sizes = [8, 32], strides = [1, 1]} : vector<64x32xf32> to vector<8x32xf32>
    %14 = arith.addf %13, %12 : vector<8x32xf32>
    %15 = math.tanh %14 : vector<8x32xf32>
    %16 = arith.truncf %15 : vector<8x32xf32> to vector<8x32xbf16>
    %cst_8 = arith.constant dense<0.000000e+00> : vector<8x32xf32>
    %17 = tpu.matmul %16, %2, %cst_8 {dimension_numbers = #tpu.dot_dimension_numbers<[1], [0], [0], [1], [0, 0, 1, 1], [], []>} : vector<8x32xbf16>, vector<32x32xbf16>, vector<8x32xf32> -> vector<8x32xf32>
    %18 = vector.extract_strided_slice %10 {offsets = [8, 0], sizes = [8, 32], strides = [1, 1]} : vector<64x32xf32> to vector<8x32xf32>
    %19 = arith.addf %18, %17 : vector<8x32xf32>
    %20 = math.tanh %19 : vector<8x32xf32>
    %21 = arith.truncf %20 : vector<8x32xf32> to vector<8x32xbf16>
    %cst_9 = arith.constant dense<0.000000e+00> : vector<8x32xf32>
    %22 = tpu.matmul %21, %2, %cst_9 {dimension_numbers = #tpu.dot_dimension_numbers<[1], [0], [0], [1], [0, 0, 1, 1], [], []>} : vector<8x32xbf16>, vector<32x32xbf16>, vector<8x32xf32> -> vector<8x32xf32>
    %23 = vector.extract_strided_slice %10 {offsets = [16, 0], sizes = [8, 32], strides = [1, 1]} : vector<64x32xf32> to vector<8x32xf32>
    %24 = arith.addf %23, %22 : vector<8x32xf32>
    %25 = math.tanh %24 : vector<8x32xf32>
    %26 = arith.truncf %25 : vector<8x32xf32> to vector<8x32xbf16>
    %cst_10 = arith.constant dense<0.000000e+00> : vector<8x32xf32>
    %27 = tpu.matmul %26, %2, %cst_10 {dimension_numbers = #tpu.dot_dimension_numbers<[1], [0], [0], [1], [0, 0, 1, 1], [], []>} : vector<8x32xbf16>, vector<32x32xbf16>, vector<8x32xf32> -> vector<8x32xf32>
    %28 = vector.extract_strided_slice %10 {offsets = [24, 0], sizes = [8, 32], strides = [1, 1]} : vector<64x32xf32> to vector<8x32xf32>
    %29 = arith.addf %28, %27 : vector<8x32xf32>
    %30 = math.tanh %29 : vector<8x32xf32>
    %31 = arith.truncf %30 : vector<8x32xf32> to vector<8x32xbf16>
    %cst_11 = arith.constant dense<0.000000e+00> : vector<8x32xf32>
    %32 = tpu.matmul %31, %2, %cst_11 {dimension_numbers = #tpu.dot_dimension_numbers<[1], [0], [0], [1], [0, 0, 1, 1], [], []>} : vector<8x32xbf16>, vector<32x32xbf16>, vector<8x32xf32> -> vector<8x32xf32>
    %33 = vector.extract_strided_slice %10 {offsets = [32, 0], sizes = [8, 32], strides = [1, 1]} : vector<64x32xf32> to vector<8x32xf32>
    %34 = arith.addf %33, %32 : vector<8x32xf32>
    %35 = math.tanh %34 : vector<8x32xf32>
    %36 = arith.truncf %35 : vector<8x32xf32> to vector<8x32xbf16>
    %cst_12 = arith.constant dense<0.000000e+00> : vector<8x32xf32>
    %37 = tpu.matmul %36, %2, %cst_12 {dimension_numbers = #tpu.dot_dimension_numbers<[1], [0], [0], [1], [0, 0, 1, 1], [], []>} : vector<8x32xbf16>, vector<32x32xbf16>, vector<8x32xf32> -> vector<8x32xf32>
    %38 = vector.extract_strided_slice %10 {offsets = [40, 0], sizes = [8, 32], strides = [1, 1]} : vector<64x32xf32> to vector<8x32xf32>
    %39 = arith.addf %38, %37 : vector<8x32xf32>
    %40 = math.tanh %39 : vector<8x32xf32>
    %41 = arith.truncf %40 : vector<8x32xf32> to vector<8x32xbf16>
    %cst_13 = arith.constant dense<0.000000e+00> : vector<8x32xf32>
    %42 = tpu.matmul %41, %2, %cst_13 {dimension_numbers = #tpu.dot_dimension_numbers<[1], [0], [0], [1], [0, 0, 1, 1], [], []>} : vector<8x32xbf16>, vector<32x32xbf16>, vector<8x32xf32> -> vector<8x32xf32>
    %43 = vector.extract_strided_slice %10 {offsets = [48, 0], sizes = [8, 32], strides = [1, 1]} : vector<64x32xf32> to vector<8x32xf32>
    %44 = arith.addf %43, %42 : vector<8x32xf32>
    %45 = math.tanh %44 : vector<8x32xf32>
    %46 = arith.truncf %45 : vector<8x32xf32> to vector<8x32xbf16>
    %cst_14 = arith.constant dense<0.000000e+00> : vector<8x32xf32>
    %47 = tpu.matmul %46, %2, %cst_14 {dimension_numbers = #tpu.dot_dimension_numbers<[1], [0], [0], [1], [0, 0, 1, 1], [], []>} : vector<8x32xbf16>, vector<32x32xbf16>, vector<8x32xf32> -> vector<8x32xf32>
    %48 = vector.extract_strided_slice %10 {offsets = [56, 0], sizes = [8, 32], strides = [1, 1]} : vector<64x32xf32> to vector<8x32xf32>
    %49 = arith.addf %48, %47 : vector<8x32xf32>
    %50 = math.tanh %49 : vector<8x32xf32>
    %51 = arith.truncf %50 : vector<8x32xf32> to vector<8x32xbf16>
    %52 = vector.extract_strided_slice %3 {offsets = [0, 0], sizes = [32, 128], strides = [1, 1]} : vector<40x128xf32> to vector<32x128xf32>
    %53 = vector.extract_strided_slice %3 {offsets = [32, 0], sizes = [1, 128], strides = [1, 1]} : vector<40x128xf32> to vector<1x128xf32>
    %54 = arith.extf %51 : vector<8x32xbf16> to vector<8x32xf32>
    %cst_15 = arith.constant dense<0.000000e+00> : vector<8x128xf32>
    %55 = tpu.matmul %54, %52, %cst_15 {dimension_numbers = #tpu.dot_dimension_numbers<[1], [0], [0], [1], [0, 0, 1, 1], [], []>} : vector<8x32xf32>, vector<32x128xf32>, vector<8x128xf32> -> vector<8x128xf32>
    %56 = vector.broadcast %53 : vector<1x128xf32> to vector<8x128xf32>
    %57 = arith.addf %55, %56 : vector<8x128xf32>
    %c0_16 = arith.constant 0 : index
    %c0_17 = arith.constant 0 : index
    %58 = vector.load %arg4[%c0_16, %c0_17] : memref<8x128xf32, #tpu.memory_space<vmem>>, vector<8x128xf32>
    tpu.vector_store %arg4[%c0_16, %c0_17], %57 {strides = array<i32>} : memref<8x128xf32, #tpu.memory_space<vmem>>, vector<8x128xf32>,
    return
  }
}

</mosaic_0001>

<llo_original>
// kernel: _lambda_.1
$region0: #{_lambda_.1}
  #allocation0 [shape = 'u32[]', space=smem, size = 0x4, offset = 0x4, fixed_abs, tag = 'smem constant byte address 0x4 - core index']
  #allocation1 [shape = 'u32[144,128]{1,0:T(1,128)}', space=vmem, size = 0x12000, scoped, tag = 'internal scratch']
  %s0 = inlined_call_operand.vmem [shape: f32[64,1], index: 0, kind: input, shape index: {}]
  %s1 = inlined_call_operand.vmem [shape: f32[8,32], index: 1, kind: input, shape index: {}]
  %s2 = inlined_call_operand.vmem [shape: bf16[32,32], index: 2, kind: input, shape index: {}]
  %s3 = inlined_call_operand.vmem [shape: f32[40,128], index: 3, kind: input, shape index: {}]
  %s4 = inlined_call_operand.vmem [shape: f32[8,128], index: 4, kind: output, shape index: {}]
  %s5 = sld [smem:[#allocation0]]
  $region26: #{_lambda_.1} parent=0
    _
  %s7 = ssub.s32 1, %s5
  %s8 = scalar_select 0, %s7, %s5
  // Predicated region
  $region2: #{_lambda_.1} parent=0 // pred_check
    _
  $region3: #{_lambda_.1} parent=0 // pred_check_branch
    %10 = sbr.rel (0) target = $region5
  $region4: #{_lambda_.1} parent=0 // pred_region
    _
  $region5: #{_lambda_.1} parent=0 // pred_fallthru
    _
  // Predicated region
  $region6: #{_lambda_.1} parent=0 // pred_check
    _
  $region7: #{_lambda_.1} parent=0 // pred_check_branch
    %12 = sbr.rel (0) target = $region9
  $region8: #{_lambda_.1} parent=0 // pred_region
    _
  $region9: #{_lambda_.1} parent=0 // pred_fallthru
    _
  // Predicated region
  $region10: #{_lambda_.1} parent=0 // pred_check
    _
  $region11: #{_lambda_.1} parent=0 // pred_check_branch
    %14 = sbr.rel (0) target = $region13
  $region12: #{_lambda_.1} parent=0 // pred_region
    _
  $region13: #{_lambda_.1} parent=0 // pred_fallthru
    _
  // Predicated region
  $region14: #{_lambda_.1} parent=0 // pred_check
    _
  $region15: #{_lambda_.1} parent=0 // pred_check_branch
    %16 = sbr.rel (0) target = $region17
  $region16: #{_lambda_.1} parent=0 // pred_region
    _
  $region17: #{_lambda_.1} parent=0 // pred_fallthru
    _
  %v18 = vld [vmem:[%s0] sm:$0xff]
  %v19 = vld [vmem:[%s0 + $0x8] sm:$0xff]
  %v20 = vld [vmem:[%s0 + $0x10] sm:$0xff]
  %v21 = vld [vmem:[%s0 + $0x18] sm:$0xff]
  %v22 = vld [vmem:[%s0 + $0x20] sm:$0xff]
  %v23 = vld [vmem:[%s0 + $0x28] sm:$0xff]
  %v24 = vld [vmem:[%s0 + $0x30] sm:$0xff]
  %v25 = vld [vmem:[%s0 + $0x38] sm:$0xff]
  %v26 = vld [vmem:[%s1] sm:$0xff]
  %v27 = vld [vmem:[%s2] sm:$0xf]
  %v28 = vld [vmem:[%s2 + $0x4] sm:$0xf]
  %v29 = vld [vmem:[%s2 + $0x8] sm:$0xf]
  %v30 = vld [vmem:[%s2 + $0xc] sm:$0xf]
  %v31 = vld [vmem:[%s3] sm:$0xff]
  %v32 = vld [vmem:[%s3 + $0x8] sm:$0xff]
  %v33 = vld [vmem:[%s3 + $0x10] sm:$0xff]
  %v34 = vld [vmem:[%s3 + $0x18] sm:$0xff]
  %v35 = vld [vmem:[%s3 + $0x20] sm:$0xff]
  %37 = vset.pattern.permute.xlu0 0
  %38 = vperm.xlu0 %37, %v18
  %v39 = vpop.permute.xlu0 %38
  %42 = vset.pattern.permute.xlu0 0
  %43 = vperm.xlu0 %42, %v19
  %v44 = vpop.permute.xlu0 %43
  %47 = vset.pattern.permute.xlu0 0
  %48 = vperm.xlu0 %47, %v20
  %v49 = vpop.permute.xlu0 %48
  %52 = vset.pattern.permute.xlu0 0
  %53 = vperm.xlu0 %52, %v21
  %v54 = vpop.permute.xlu0 %53
  %57 = vset.pattern.permute.xlu0 0
  %58 = vperm.xlu0 %57, %v22
  %v59 = vpop.permute.xlu0 %58
  %62 = vset.pattern.permute.xlu0 0
  %63 = vperm.xlu0 %62, %v23
  %v64 = vpop.permute.xlu0 %63
  %67 = vset.pattern.permute.xlu0 0
  %68 = vperm.xlu0 %67, %v24
  %v69 = vpop.permute.xlu0 %68
  %72 = vset.pattern.permute.xlu0 0
  %73 = vperm.xlu0 %72, %v25
  %v74 = vpop.permute.xlu0 %73
  %v76 = vlaneseq
  %v77 = vshrl.u32 %v76, 7
  %v78 = vsub.s32 0, %v77
  %v79 = vrot.slane %v26, %v78
  %v80 = vmul.f32 %v39, %v79
  %v81 = vmul.f32 %v44, %v79
  %v82 = vmul.f32 %v49, %v79
  %v83 = vmul.f32 %v54, %v79
  %v84 = vmul.f32 %v59, %v79
  %v85 = vmul.f32 %v64, %v79
  %v86 = vmul.f32 %v69, %v79
  %v87 = vmul.f32 %v74, %v79
  %v88 = vlaneseq
  %v89 = vshrl.u32 %v88, 7
  %v90 = vsub.s32 1, %v89
  %v91 = vrot.slane %v26, %v90
  %v92 = vadd.f32 %v80, %v91
  %v93 = vadd.f32 %v81, %v91
  %v94 = vadd.f32 %v82, %v91
  %v95 = vadd.f32 %v83, %v91
  %v96 = vadd.f32 %v84, %v91
  %v97 = vadd.f32 %v85, %v91
  %v98 = vadd.f32 %v86, %v91
  %v99 = vadd.f32 %v87, %v91
  %v104 = vunpack.c.l.b16 %v27
  %v105 = vunpack.c.l.b16 %v28
  %v106 = vunpack.c.l.b16 %v29
  %v107 = vunpack.c.l.b16 %v30
  %v108 = vpack.c.b16 %v105, %v104
  %v109 = vpack.c.b16 %v107, %v106
  %vm112 = vcmask 261120
  %v114 = vsel %vm112, 0, 0
  %116 = vmatprep.subr.bf16.mxu0 0
  %117 = vmatpush1.bf16.msra.mxu0 %v108
  %118 = vmatprep.subr.bf16.mxu0 0
  %119 = vmatpush1.bf16.msra.mxu0 %v109
  %120 = vmatprep.subr.bf16.mxu0 0
  %121 = vmatpush1.bf16.msra.mxu0 0
  %122 = vmatprep.subr.bf16.mxu0 0
  %123 = vmatpush1.bf16.msra.mxu0 0
  %124 = vmatprep.subr.bf16.mxu0 0
  %125 = vmatpush1.bf16.msra.mxu0 0
  %126 = vmatprep.subr.bf16.mxu0 0
  %127 = vmatpush1.bf16.msra.mxu0 0
  %128 = vmatprep.subr.bf16.mxu0 0
  %129 = vmatpush1.bf16.msra.mxu0 0
  %130 = vmatprep.subr.bf16.mxu0 0
  %131 = vmatpush1.bf16.msra.mxu0 0
  %132 = vmatprep.subr.bf16.mxu0 0
  %133 = vmatpush1.bf16.msra.mxu0 0
  %134 = vmatprep.subr.bf16.mxu0 0
  %135 = vmatpush1.bf16.msra.mxu0 0
  %136 = vmatprep.subr.bf16.mxu0 0
  %137 = vmatpush1.bf16.msra.mxu0 0
  %138 = vmatprep.subr.bf16.mxu0 0
  %139 = vmatpush1.bf16.msra.mxu0 0
  %140 = vmatprep.subr.bf16.mxu0 0
  %141 = vmatpush1.bf16.msra.mxu0 0
  %142 = vmatprep.subr.bf16.mxu0 0
  %143 = vmatpush1.bf16.msra.mxu0 0
  %144 = vmatprep.subr.bf16.mxu0 0
  %145 = vmatpush1.bf16.msra.mxu0 0
  %146 = vmatprep.subr.bf16.mxu0 0
  %147 = vmatpush1.bf16.msra.mxu0 0
  %148 = vmatprep.mubr.bf16.mxu0 0
  %149 = vmatmul.mubr.bf16.gmra.mrb[0].mxu0 %v114
  %v150 = vpop.f32.mrb[0].mxu0
  %v151 = vadd.f32 0.0, %v150
  %v152 = vpop.f32.mrb[0].mxu0
  %v153 = vpop.f32.mrb[0].mxu0
  %v154 = vpop.f32.mrb[0].mxu0
  %155 = vdwg.mxu0
  %v156 = vadd.f32 %v92, %v151
  %v157 = vtanh.pop %v156
  %v158 = vpack.c.bf16 %v157, %v157
  %v160 = vsel %vm112, %v158, 0
  %162 = vmatprep.subr.bf16.mxu0 0
  %163 = vmatpush1.bf16.msra.mxu0 %v108
  %164 = vmatprep.subr.bf16.mxu0 0
  %165 = vmatpush1.bf16.msra.mxu0 %v109
  %166 = vmatprep.subr.bf16.mxu0 0
  %167 = vmatpush1.bf16.msra.mxu0 0
  %168 = vmatprep.subr.bf16.mxu0 0
  %169 = vmatpush1.bf16.msra.mxu0 0
  %170 = vmatprep.subr.bf16.mxu0 0
  %171 = vmatpush1.bf16.msra.mxu0 0
  %172 = vmatprep.subr.bf16.mxu0 0
  %173 = vmatpush1.bf16.msra.mxu0 0
  %174 = vmatprep.subr.bf16.mxu0 0
  %175 = vmatpush1.bf16.msra.mxu0 0
  %176 = vmatprep.subr.bf16.mxu0 0
  %177 = vmatpush1.bf16.msra.mxu0 0
  %178 = vmatprep.subr.bf16.mxu0 0
  %179 = vmatpush1.bf16.msra.mxu0 0
  %180 = vmatprep.subr.bf16.mxu0 0
  %181 = vmatpush1.bf16.msra.mxu0 0
  %182 = vmatprep.subr.bf16.mxu0 0
  %183 = vmatpush1.bf16.msra.mxu0 0
  %184 = vmatprep.subr.bf16.mxu0 0
  %185 = vmatpush1.bf16.msra.mxu0 0
  %186 = vmatprep.subr.bf16.mxu0 0
  %187 = vmatpush1.bf16.msra.mxu0 0
  %188 = vmatprep.subr.bf16.mxu0 0
  %189 = vmatpush1.bf16.msra.mxu0 0
  %190 = vmatprep.subr.bf16.mxu0 0
  %191 = vmatpush1.bf16.msra.mxu0 0
  %192 = vmatprep.subr.bf16.mxu0 0
  %193 = vmatpush1.bf16.msra.mxu0 0
  %194 = vmatprep.mubr.bf16.mxu0 0
  %195 = vmatmul.mubr.bf16.gmra.mrb[0].mxu0 %v160
  %v196 = vpop.f32.mrb[0].mxu0
  %v197 = vadd.f32 0.0, %v196
  %v198 = vpop.f32.mrb[0].mxu0
  %v199 = vpop.f32.mrb[0].mxu0
  %v200 = vpop.f32.mrb[0].mxu0
  %201 = vdwg.mxu0
  %v202 = vadd.f32 %v93, %v197
  %v203 = vtanh.pop %v202
  %v204 = vpack.c.bf16 %v203, %v203
  %v206 = vsel %vm112, %v204, 0
  %208 = vmatprep.subr.bf16.mxu0 0
  %209 = vmatpush1.bf16.msra.mxu0 %v108
  %210 = vmatprep.subr.bf16.mxu0 0
  %211 = vmatpush1.bf16.msra.mxu0 %v109
  %212 = vmatprep.subr.bf16.mxu0 0
  %213 = vmatpush1.bf16.msra.mxu0 0
  %214 = vmatprep.subr.bf16.mxu0 0
  %215 = vmatpush1.bf16.msra.mxu0 0
  %216 = vmatprep.subr.bf16.mxu0 0
  %217 = vmatpush1.bf16.msra.mxu0 0
  %218 = vmatprep.subr.bf16.mxu0 0
  %219 = vmatpush1.bf16.msra.mxu0 0
  %220 = vmatprep.subr.bf16.mxu0 0
  %221 = vmatpush1.bf16.msra.mxu0 0
  %222 = vmatprep.subr.bf16.mxu0 0
  %223 = vmatpush1.bf16.msra.mxu0 0
  %224 = vmatprep.subr.bf16.mxu0 0
  %225 = vmatpush1.bf16.msra.mxu0 0
  %226 = vmatprep.subr.bf16.mxu0 0
  %227 = vmatpush1.bf16.msra.mxu0 0
  %228 = vmatprep.subr.bf16.mxu0 0
  %229 = vmatpush1.bf16.msra.mxu0 0
  %230 = vmatprep.subr.bf16.mxu0 0
  %231 = vmatpush1.bf16.msra.mxu0 0
  %232 = vmatprep.subr.bf16.mxu0 0
  %233 = vmatpush1.bf16.msra.mxu0 0
  %234 = vmatprep.subr.bf16.mxu0 0
  %235 = vmatpush1.bf16.msra.mxu0 0
  %236 = vmatprep.subr.bf16.mxu0 0
  %237 = vmatpush1.bf16.msra.mxu0 0
  %238 = vmatprep.subr.bf16.mxu0 0
  %239 = vmatpush1.bf16.msra.mxu0 0
  %240 = vmatprep.mubr.bf16.mxu0 0
  %241 = vmatmul.mubr.bf16.gmra.mrb[0].mxu0 %v206
  %v242 = vpop.f32.mrb[0].mxu0
  %v243 = vadd.f32 0.0, %v242
  %v244 = vpop.f32.mrb[0].mxu0
  %v245 = vpop.f32.mrb[0].mxu0
  %v246 = vpop.f32.mrb[0].mxu0
  %247 = vdwg.mxu0
  %v248 = vadd.f32 %v94, %v243
  %v249 = vtanh.pop %v248
  %v250 = vpack.c.bf16 %v249, %v249
  %v252 = vsel %vm112, %v250, 0
  %254 = vmatprep.subr.bf16.mxu0 0
  %255 = vmatpush1.bf16.msra.mxu0 %v108
  %256 = vmatprep.subr.bf16.mxu0 0
  %257 = vmatpush1.bf16.msra.mxu0 %v109
  %258 = vmatprep.subr.bf16.mxu0 0
  %259 = vmatpush1.bf16.msra.mxu0 0
  %260 = vmatprep.subr.bf16.mxu0 0
  %261 = vmatpush1.bf16.msra.mxu0 0
  %262 = vmatprep.subr.bf16.mxu0 0
  %263 = vmatpush1.bf16.msra.mxu0 0
  %264 = vmatprep.subr.bf16.mxu0 0
  %265 = vmatpush1.bf16.msra.mxu0 0
  %266 = vmatprep.subr.bf16.mxu0 0
  %267 = vmatpush1.bf16.msra.mxu0 0
  %268 = vmatprep.subr.bf16.mxu0 0
  %269 = vmatpush1.bf16.msra.mxu0 0
  %270 = vmatprep.subr.bf16.mxu0 0
  %271 = vmatpush1.bf16.msra.mxu0 0
  %272 = vmatprep.subr.bf16.mxu0 0
  %273 = vmatpush1.bf16.msra.mxu0 0
  %274 = vmatprep.subr.bf16.mxu0 0
  %275 = vmatpush1.bf16.msra.mxu0 0
  %276 = vmatprep.subr.bf16.mxu0 0
  %277 = vmatpush1.bf16.msra.mxu0 0
  %278 = vmatprep.subr.bf16.mxu0 0
  %279 = vmatpush1.bf16.msra.mxu0 0
  %280 = vmatprep.subr.bf16.mxu0 0
  %281 = vmatpush1.bf16.msra.mxu0 0
  %282 = vmatprep.subr.bf16.mxu0 0
  %283 = vmatpush1.bf16.msra.mxu0 0
  %284 = vmatprep.subr.bf16.mxu0 0
  %285 = vmatpush1.bf16.msra.mxu0 0
  %286 = vmatprep.mubr.bf16.mxu0 0
  %287 = vmatmul.mubr.bf16.gmra.mrb[0].mxu0 %v252
  %v288 = vpop.f32.mrb[0].mxu0
  %v289 = vadd.f32 0.0, %v288
  %v290 = vpop.f32.mrb[0].mxu0
  %v291 = vpop.f32.mrb[0].mxu0
  %v292 = vpop.f32.mrb[0].mxu0
  %293 = vdwg.mxu0
  %v294 = vadd.f32 %v95, %v289
  %v295 = vtanh.pop %v294
  %v296 = vpack.c.bf16 %v295, %v295
  %v298 = vsel %vm112, %v296, 0
  %300 = vmatprep.subr.bf16.mxu0 0
  %301 = vmatpush1.bf16.msra.mxu0 %v108
  %302 = vmatprep.subr.bf16.mxu0 0
  %303 = vmatpush1.bf16.msra.mxu0 %v109
  %304 = vmatprep.subr.bf16.mxu0 0
  %305 = vmatpush1.bf16.msra.mxu0 0
  %306 = vmatprep.subr.bf16.mxu0 0
  %307 = vmatpush1.bf16.msra.mxu0 0
  %308 = vmatprep.subr.bf16.mxu0 0
  %309 = vmatpush1.bf16.msra.mxu0 0
  %310 = vmatprep.subr.bf16.mxu0 0
  %311 = vmatpush1.bf16.msra.mxu0 0
  %312 = vmatprep.subr.bf16.mxu0 0
  %313 = vmatpush1.bf16.msra.mxu0 0
  %314 = vmatprep.subr.bf16.mxu0 0
  %315 = vmatpush1.bf16.msra.mxu0 0
  %316 = vmatprep.subr.bf16.mxu0 0
  %317 = vmatpush1.bf16.msra.mxu0 0
  %318 = vmatprep.subr.bf16.mxu0 0
  %319 = vmatpush1.bf16.msra.mxu0 0
  %320 = vmatprep.subr.bf16.mxu0 0
  %321 = vmatpush1.bf16.msra.mxu0 0
  %322 = vmatprep.subr.bf16.mxu0 0
  %323 = vmatpush1.bf16.msra.mxu0 0
  %324 = vmatprep.subr.bf16.mxu0 0
  %325 = vmatpush1.bf16.msra.mxu0 0
  %326 = vmatprep.subr.bf16.mxu0 0
  %327 = vmatpush1.bf16.msra.mxu0 0
  %328 = vmatprep.subr.bf16.mxu0 0
  %329 = vmatpush1.bf16.msra.mxu0 0
  %330 = vmatprep.subr.bf16.mxu0 0
  %331 = vmatpush1.bf16.msra.mxu0 0
  %332 = vmatprep.mubr.bf16.mxu0 0
  %333 = vmatmul.mubr.bf16.gmra.mrb[0].mxu0 %v298
  %v334 = vpop.f32.mrb[0].mxu0
  %v335 = vadd.f32 0.0, %v334
  %v336 = vpop.f32.mrb[0].mxu0
  %v337 = vpop.f32.mrb[0].mxu0
  %v338 = vpop.f32.mrb[0].mxu0
  %339 = vdwg.mxu0
  %v340 = vadd.f32 %v96, %v335
  %v341 = vtanh.pop %v340
  %v342 = vpack.c.bf16 %v341, %v341
  %v344 = vsel %vm112, %v342, 0
  %346 = vmatprep.subr.bf16.mxu0 0
  %347 = vmatpush1.bf16.msra.mxu0 %v108
  %348 = vmatprep.subr.bf16.mxu0 0
  %349 = vmatpush1.bf16.msra.mxu0 %v109
  %350 = vmatprep.subr.bf16.mxu0 0
  %351 = vmatpush1.bf16.msra.mxu0 0
  %352 = vmatprep.subr.bf16.mxu0 0
  %353 = vmatpush1.bf16.msra.mxu0 0
  %354 = vmatprep.subr.bf16.mxu0 0
  %355 = vmatpush1.bf16.msra.mxu0 0
  %356 = vmatprep.subr.bf16.mxu0 0
  %357 = vmatpush1.bf16.msra.mxu0 0
  %358 = vmatprep.subr.bf16.mxu0 0
  %359 = vmatpush1.bf16.msra.mxu0 0
  %360 = vmatprep.subr.bf16.mxu0 0
  %361 = vmatpush1.bf16.msra.mxu0 0
  %362 = vmatprep.subr.bf16.mxu0 0
  %363 = vmatpush1.bf16.msra.mxu0 0
  %364 = vmatprep.subr.bf16.mxu0 0
  %365 = vmatpush1.bf16.msra.mxu0 0
  %366 = vmatprep.subr.bf16.mxu0 0
  %367 = vmatpush1.bf16.msra.mxu0 0
  %368 = vmatprep.subr.bf16.mxu0 0
  %369 = vmatpush1.bf16.msra.mxu0 0
  %370 = vmatprep.subr.bf16.mxu0 0
  %371 = vmatpush1.bf16.msra.mxu0 0
  %372 = vmatprep.subr.bf16.mxu0 0
  %373 = vmatpush1.bf16.msra.mxu0 0
  %374 = vmatprep.subr.bf16.mxu0 0
  %375 = vmatpush1.bf16.msra.mxu0 0
  %376 = vmatprep.subr.bf16.mxu0 0
  %377 = vmatpush1.bf16.msra.mxu0 0
  %378 = vmatprep.mubr.bf16.mxu0 0
  %379 = vmatmul.mubr.bf16.gmra.mrb[0].mxu0 %v344
  %v380 = vpop.f32.mrb[0].mxu0
  %v381 = vadd.f32 0.0, %v380
  %v382 = vpop.f32.mrb[0].mxu0
  %v383 = vpop.f32.mrb[0].mxu0
  %v384 = vpop.f32.mrb[0].mxu0
  %385 = vdwg.mxu0
  %v386 = vadd.f32 %v97, %v381
  %v387 = vtanh.pop %v386
  %v388 = vpack.c.bf16 %v387, %v387
  %v390 = vsel %vm112, %v388, 0
  %392 = vmatprep.subr.bf16.mxu0 0
  %393 = vmatpush1.bf16.msra.mxu0 %v108
  %394 = vmatprep.subr.bf16.mxu0 0
  %395 = vmatpush1.bf16.msra.mxu0 %v109
  %396 = vmatprep.subr.bf16.mxu0 0
  %397 = vmatpush1.bf16.msra.mxu0 0
  %398 = vmatprep.subr.bf16.mxu0 0
  %399 = vmatpush1.bf16.msra.mxu0 0
  %400 = vmatprep.subr.bf16.mxu0 0
  %401 = vmatpush1.bf16.msra.mxu0 0
  %402 = vmatprep.subr.bf16.mxu0 0
  %403 = vmatpush1.bf16.msra.mxu0 0
  %404 = vmatprep.subr.bf16.mxu0 0
  %405 = vmatpush1.bf16.msra.mxu0 0
  %406 = vmatprep.subr.bf16.mxu0 0
  %407 = vmatpush1.bf16.msra.mxu0 0
  %408 = vmatprep.subr.bf16.mxu0 0
  %409 = vmatpush1.bf16.msra.mxu0 0
  %410 = vmatprep.subr.bf16.mxu0 0
  %411 = vmatpush1.bf16.msra.mxu0 0
  %412 = vmatprep.subr.bf16.mxu0 0
  %413 = vmatpush1.bf16.msra.mxu0 0
  %414 = vmatprep.subr.bf16.mxu0 0
  %415 = vmatpush1.bf16.msra.mxu0 0
  %416 = vmatprep.subr.bf16.mxu0 0
  %417 = vmatpush1.bf16.msra.mxu0 0
  %418 = vmatprep.subr.bf16.mxu0 0
  %419 = vmatpush1.bf16.msra.mxu0 0
  %420 = vmatprep.subr.bf16.mxu0 0
  %421 = vmatpush1.bf16.msra.mxu0 0
  %422 = vmatprep.subr.bf16.mxu0 0
  %423 = vmatpush1.bf16.msra.mxu0 0
  %424 = vmatprep.mubr.bf16.mxu0 0
  %425 = vmatmul.mubr.bf16.gmra.mrb[0].mxu0 %v390
  %v426 = vpop.f32.mrb[0].mxu0
  %v427 = vadd.f32 0.0, %v426
  %v428 = vpop.f32.mrb[0].mxu0
  %v429 = vpop.f32.mrb[0].mxu0
  %v430 = vpop.f32.mrb[0].mxu0
  %431 = vdwg.mxu0
  %v432 = vadd.f32 %v98, %v427
  %v433 = vtanh.pop %v432
  %v434 = vpack.c.bf16 %v433, %v433
  %v436 = vsel %vm112, %v434, 0
  %438 = vmatprep.subr.bf16.mxu0 0
  %439 = vmatpush1.bf16.msra.mxu0 %v108
  %440 = vmatprep.subr.bf16.mxu0 0
  %441 = vmatpush1.bf16.msra.mxu0 %v109
  %442 = vmatprep.subr.bf16.mxu0 0
  %443 = vmatpush1.bf16.msra.mxu0 0
  %444 = vmatprep.subr.bf16.mxu0 0
  %445 = vmatpush1.bf16.msra.mxu0 0
  %446 = vmatprep.subr.bf16.mxu0 0
  %447 = vmatpush1.bf16.msra.mxu0 0
  %448 = vmatprep.subr.bf16.mxu0 0
  %449 = vmatpush1.bf16.msra.mxu0 0
  %450 = vmatprep.subr.bf16.mxu0 0
  %451 = vmatpush1.bf16.msra.mxu0 0
  %452 = vmatprep.subr.bf16.mxu0 0
  %453 = vmatpush1.bf16.msra.mxu0 0
  %454 = vmatprep.subr.bf16.mxu0 0
  %455 = vmatpush1.bf16.msra.mxu0 0
  %456 = vmatprep.subr.bf16.mxu0 0
  %457 = vmatpush1.bf16.msra.mxu0 0
  %458 = vmatprep.subr.bf16.mxu0 0
  %459 = vmatpush1.bf16.msra.mxu0 0
  %460 = vmatprep.subr.bf16.mxu0 0
  %461 = vmatpush1.bf16.msra.mxu0 0
  %462 = vmatprep.subr.bf16.mxu0 0
  %463 = vmatpush1.bf16.msra.mxu0 0
  %464 = vmatprep.subr.bf16.mxu0 0
  %465 = vmatpush1.bf16.msra.mxu0 0
  %466 = vmatprep.subr.bf16.mxu0 0
  %467 = vmatpush1.bf16.msra.mxu0 0
  %468 = vmatprep.subr.bf16.mxu0 0
  %469 = vmatpush1.bf16.msra.mxu0 0
  %470 = vmatprep.mubr.bf16.mxu0 0
  %471 = vmatmul.mubr.bf16.gmra.mrb[0].mxu0 %v436
  %v472 = vpop.f32.mrb[0].mxu0
  %v473 = vadd.f32 0.0, %v472
  %v474 = vpop.f32.mrb[0].mxu0
  %v475 = vpop.f32.mrb[0].mxu0
  %v476 = vpop.f32.mrb[0].mxu0
  %477 = vdwg.mxu0
  %v478 = vadd.f32 %v99, %v473
  %v479 = vtanh.pop %v478
  %v480 = vpack.c.bf16 %v479, %v479
  %v481 = vunpack.c.l.bf16 %v480
  %v482 = vlaneseq
  %v483 = vshrl.u32 %v482, 7
  %v484 = vsub.s32 0, %v483
  %v485 = vrot.slane %v35, %v484
  %v487 = vsel %vm112, %v481, 0
  %489 = vmatprep.subr.mxu0 0.0
  %490 = vmatpush1.msra.mxu0 %v31
  %491 = vmatprep.subr.mxu0 0.0
  %492 = vmatpush1.msra.mxu0 %v32
  %493 = vmatprep.subr.mxu0 0.0
  %494 = vmatpush1.msra.mxu0 %v33
  %495 = vmatprep.subr.mxu0 0.0
  %496 = vmatpush1.msra.mxu0 %v34
  %497 = vmatprep.subr.mxu0 0.0
  %498 = vmatpush1.msra.mxu0 0.0
  %499 = vmatprep.subr.mxu0 0.0
  %500 = vmatpush1.msra.mxu0 0.0
  %501 = vmatprep.subr.mxu0 0.0
  %502 = vmatpush1.msra.mxu0 0.0
  %503 = vmatprep.subr.mxu0 0.0
  %504 = vmatpush1.msra.mxu0 0.0
  %505 = vmatprep.subr.mxu0 0.0
  %506 = vmatpush1.msra.mxu0 0.0
  %507 = vmatprep.subr.mxu0 0.0
  %508 = vmatpush1.msra.mxu0 0.0
  %509 = vmatprep.subr.mxu0 0.0
  %510 = vmatpush1.msra.mxu0 0.0
  %511 = vmatprep.subr.mxu0 0.0
  %512 = vmatpush1.msra.mxu0 0.0
  %513 = vmatprep.subr.mxu0 0.0
  %514 = vmatpush1.msra.mxu0 0.0
  %515 = vmatprep.subr.mxu0 0.0
  %516 = vmatpush1.msra.mxu0 0.0
  %517 = vmatprep.subr.mxu0 0.0
  %518 = vmatpush1.msra.mxu0 0.0
  %519 = vmatprep.subr.mxu0 0.0
  %520 = vmatpush1.msra.mxu0 0.0
  %521 = vmatprep.subr.mxu0 0.0
  %522 = vmatpush1.msra.mxu0 0.0
  %523 = vmatprep.subr.mxu0 0.0
  %524 = vmatpush1.msra.mxu0 0.0
  %525 = vmatprep.subr.mxu0 0.0
  %526 = vmatpush1.msra.mxu0 0.0
  %527 = vmatprep.subr.mxu0 0.0
  %528 = vmatpush1.msra.mxu0 0.0
  %529 = vmatprep.subr.mxu0 0.0
  %530 = vmatpush1.msra.mxu0 0.0
  %531 = vmatprep.subr.mxu0 0.0
  %532 = vmatpush1.msra.mxu0 0.0
  %533 = vmatprep.subr.mxu0 0.0
  %534 = vmatpush1.msra.mxu0 0.0
  %535 = vmatprep.subr.mxu0 0.0
  %536 = vmatpush1.msra.mxu0 0.0
  %537 = vmatprep.subr.mxu0 0.0
  %538 = vmatpush1.msra.mxu0 0.0
  %539 = vmatprep.subr.mxu0 0.0
  %540 = vmatpush1.msra.mxu0 0.0
  %541 = vmatprep.subr.mxu0 0.0
  %542 = vmatpush1.msra.mxu0 0.0
  %543 = vmatprep.subr.mxu0 0.0
  %544 = vmatpush1.msra.mxu0 0.0
  %545 = vmatprep.subr.mxu0 0.0
  %546 = vmatpush1.msra.mxu0 0.0
  %547 = vmatprep.subr.mxu0 0.0
  %548 = vmatpush1.msra.mxu0 0.0
  %549 = vmatprep.subr.mxu0 0.0
  %550 = vmatpush1.msra.mxu0 0.0
  %551 = vmatprep.subr.mxu0 0.0
  %552 = vmatpush1.msra.mxu0 0.0
  %553 = vmatprep.mubr.f32.mxu0 0.0
  %554 = vmatmul.mubr.f32.gmra.mrb[0].mxu0 %v487
  %v555 = vpop.f32.mrb[0].mxu0
  %v556 = vadd.f32 %v485, %v555
  %v557 = vpop.f32.mrb[0].mxu0
  %558 = vdwg.mxu0
  %559 = vst [vmem:[%s4] sm:$0xff] %v556
  // Predicated region
  $region18: #{_lambda_.1} parent=0 // pred_check
    _
  $region19: #{_lambda_.1} parent=0 // pred_check_branch
    %561 = sbr.rel (0) target = $region21
  $region20: #{_lambda_.1} parent=0 // pred_region
    _
  $region21: #{_lambda_.1} parent=0 // pred_fallthru
    _
  // Predicated region
  $region22: #{_lambda_.1} parent=0 // pred_check
    _
  $region23: #{_lambda_.1} parent=0 // pred_check_branch
    %563 = sbr.rel (0) target = $region25
  $region24: #{_lambda_.1} parent=0 // pred_region
    _
  $region25: #{_lambda_.1} parent=0 // pred_fallthru
    _

</llo_original>
